<compile_context>
chip_gen: v7x
topology: tpu7x:2x2x1
jax: 0.10.0
libtpu: 0.0.40
codegen_flags: <defaults>
</compile_context>

<pallas_src>
import jax
import jax.numpy as jnp
from jax.experimental import pallas as pl
from jax.experimental.pallas import tpu as pltpu


def _round_up(v, m):
    return (v + m - 1) // m * m


# ---------------------------------------------------------------------------
# Kernel A: blended impulse build (one shot, elementwise).
# t/noise/env enter as one (1, Lp) row; entries >= L are zero.
# Output imp_eff[j] = blend * impulse[j] * envelope[j] + (1-blend) * delta0[j].
# ---------------------------------------------------------------------------
def _impulse_kernel(params_ref, t_ref, noise_ref, env_ref, imp_ref):
    decay = params_ref[0]
    wet = params_ref[1]
    noise_scale = params_ref[2]
    blend = params_ref[3]

    t = t_ref[...]                          # (1, Lp)
    rnd = noise_ref[...]                    # (1, Lp)
    env = env_ref[...]                      # (1, Lp)

    # Numerically stable softplus(-decay) / sigmoid(wet) on (1,1) vectors.
    neg_d = jnp.full((1, 1), -decay, dtype=jnp.float32)
    sp = jnp.maximum(neg_d, 0.0) + jnp.log1p(jnp.exp(-jnp.abs(neg_d)))
    w = jnp.full((1, 1), wet, dtype=jnp.float32)
    ew = jnp.exp(-jnp.abs(w))
    sig_wet = jnp.where(w >= 0.0, 1.0 / (1.0 + ew), ew / (1.0 + ew))

    t_env = jnp.exp(-sp * t * 500.0)
    noise = t_env * noise_scale * rnd
    # TODO(synk): LearnableHighpass ("lowpass_in") definition not provided;
    # treated as identity, so noise is scaled by noise_scale a second time
    # (matches the in-script reference).
    noise = noise * noise_scale
    imp = noise * sig_wet

    lane = jax.lax.broadcasted_iota(jnp.int32, t.shape, 1)
    is_tap0 = lane == 0
    imp = jnp.where(is_tap0, 1.0, imp)
    imp = imp * env
    # Fold the wet/dry blend into the taps:
    #   blend*(imp (*) x) + (1-blend)*x  ==  (blend*imp + (1-blend)*delta0) (*) x
    imp = blend * imp + jnp.where(is_tap0, 1.0 - blend, 0.0)
    imp_ref[...] = imp


# ---------------------------------------------------------------------------
# Kernel B: blocked causal FIR on the MXU.
# One grid step = M rows of W output samples:
#     OUT[i, :] = sum_d  X[row(i) - d, :] @ R[d]         (d = 0..K)
# The K-row causal halo comes from a small (Kh, W) view of the previous block;
# for block 0 the history is zero.  All operands feed the MXU as bf16 with
# f32 accumulation.
# ---------------------------------------------------------------------------
def _fir_block_kernel(r_ref, halo_ref, xcur_ref, o_ref, ctx_ref):
    b = pl.program_id(0)
    M = xcur_ref.shape[0]                  # output rows per block
    Kh = halo_ref.shape[0]                 # halo rows (>= K, multiple of 8)
    K = r_ref.shape[0] - 1                 # number of extra tap slabs

    # Context rows [block_start - Kh, block_start + M) of the signal (f32 so
    # the per-d row-offset slices below stay on the proven 32-bit path).
    halo = halo_ref[...]
    ctx_ref[:Kh, :] = jnp.where(b > 0, halo, jnp.zeros_like(halo)).astype(
        jnp.float32)
    ctx_ref[Kh:, :] = xcur_ref[...].astype(jnp.float32)

    # d = 0 slab: aligned, straight from the bf16 input block.
    acc = jnp.dot(xcur_ref[...], r_ref[0],
                  preferred_element_type=jnp.float32)
    # d >= 1 slabs: signal rows shifted back by d; small static loop of matmuls.
    for d in range(1, K + 1):
        lhs = ctx_ref[Kh - d:Kh - d + M, :].astype(jnp.bfloat16)
        acc = acc + jnp.dot(lhs, r_ref[d],
                            preferred_element_type=jnp.float32)
    o_ref[...] = acc.astype(o_ref.dtype)


def parametric_ir_reverb(x, t_unused, params, t_vec, noise_rand, envelope, *,
                         row_width=256, block_rows=512, min_blocks=8):
    """x: (N,) float32 audio. Returns (N,) float32, matching forward(x, t)."""
    del t_unused                           # `t` is unused by the PyTorch forward
    N = x.shape[0]
    L = t_vec.shape[0]
    W = row_width                          # samples per row (lane-dense)
    Lp = _round_up(L, W)
    K = Lp // W                            # number of W-sample tap blocks
    Kh = _round_up(K, 8)                   # halo rows per block (sublane aligned)

    params = params.astype(jnp.float32)

    def _row(v):
        r = jnp.zeros((Lp,), jnp.float32).at[:L].set(v.astype(jnp.float32))
        return r.reshape(1, Lp)

    # ---- Kernel A: blended impulse (1, Lp) ----
    imp = pl.pallas_call(
        _impulse_kernel,
        out_shape=jax.ShapeDtypeStruct((1, Lp), jnp.float32),
        in_specs=[
            pl.BlockSpec(memory_space=pltpu.MemorySpace.SMEM),   # params (4,)
            pl.BlockSpec(memory_space=pltpu.MemorySpace.VMEM),   # t      (1, Lp)
            pl.BlockSpec(memory_space=pltpu.MemorySpace.VMEM),   # noise  (1, Lp)
            pl.BlockSpec(memory_space=pltpu.MemorySpace.VMEM),   # env    (1, Lp)
        ],
        out_specs=pl.BlockSpec(memory_space=pltpu.MemorySpace.VMEM),
    )(params, _row(t_vec), _row(noise_rand), _row(envelope))

    # ---- Toeplitz tap slabs (one shot, plain JAX, off the hot path):
    #      R[d, l, c] = imp_eff[d*W + c - l], zero outside [0, Lp).  bf16 MXU.
    imp_flat = imp.reshape(Lp)
    d_idx = jnp.arange(K + 1, dtype=jnp.int32)[:, None, None]
    l_idx = jnp.arange(W, dtype=jnp.int32)[None, :, None]
    c_idx = jnp.arange(W, dtype=jnp.int32)[None, None, :]
    j = d_idx * W + c_idx - l_idx
    taps = jnp.where((j >= 0) & (j < Lp),
                     imp_flat[jnp.clip(j, 0, Lp - 1)],
                     0.0).astype(jnp.bfloat16)

    # ---- FIR tiling: big blocks, but keep >= min_blocks for core parallelism.
    NBx = pl.cdiv(N, W)                    # signal rows before block padding
    M = max(Kh, min(_round_up(block_rows, Kh),
                    _round_up(pl.cdiv(NBx, min_blocks), Kh)))
    num_blocks = pl.cdiv(NBx, M)
    NB = num_blocks * M
    NP = NB * W

    # Single pad+cast of the signal into (NB, W) bf16 rows (no extra zero-row
    # concat; block-0 causal history is zero-filled inside the kernel).
    x_rows = jnp.pad(x.astype(jnp.bfloat16), (0, NP - N)).reshape(NB, W)

    conv = pl.pallas_call(
        _fir_block_kernel,
        out_shape=jax.ShapeDtypeStruct((NB, W), jnp.float32),
        grid_spec=pltpu.PrefetchScalarGridSpec(
            num_scalar_prefetch=0,
            grid=(num_blocks,),
            in_specs=[
                # Tap slabs: constant index_map -> VMEM-resident across steps.
                pl.BlockSpec((K + 1, W, W), lambda b: (0, 0, 0)),
                # Halo: last Kh rows of the previous block (clamped at b=0;
                # unused there -- the kernel zero-fills the history).
                pl.BlockSpec((Kh, W),
                             lambda b: (jnp.maximum(b * (M // Kh) - 1, 0), 0)),
                # Current block of the signal.
                pl.BlockSpec((M, W), lambda b: (b, 0)),
            ],
            out_specs=pl.BlockSpec((M, W), lambda b: (b, 0)),
            scratch_shapes=[pltpu.VMEM((M + Kh, W), jnp.float32)],
        ),
        compiler_params=pltpu.CompilerParams(
            dimension_semantics=("parallel",)),
    )(taps, x_rows, x_rows)

    return conv.reshape(NP)[:N]


def _reference_forward(x, params, t_vec, noise_rand, envelope):
    """Pure-JAX mirror of the PyTorch forward (fft_convolve path)."""
    decay, wet, noise_scale, blend = (params[i] for i in range(4))
    t_env = jnp.exp(-jnp.log1p(jnp.exp(-decay)) * t_vec * 500.0)
    noise = t_env * noise_scale * noise_rand
    noise = noise * noise_scale            # lowpass_in treated as identity
    imp = noise * (1.0 / (1.0 + jnp.exp(-wet)))
    imp = imp.at[0].set(1.0)
    imp = imp * envelope
    N = x.shape[0]
    L = imp.shape[0]
    imp = jnp.pad(imp, (0, N - L))
    sig = jnp.pad(x, (0, N))
    ker = jnp.pad(imp, (N, 0))
    conv = jnp.fft.irfft(jnp.fft.rfft(sig) * jnp.fft.rfft(ker))
    conv = conv[conv.shape[-1] // 2:]
    return blend * conv + (1.0 - blend) * x


if __name__ == "__main__":
    # Module-default impulse length; ~12 s of audio so the kernel actually
    # runs with the intended large blocks (M=256 rows x 256 samples, 8 blocks).
    L = 2048
    SR = 44100
    N = 1 << 19

    key = jax.random.PRNGKey(0)
    kx, kn = jax.random.split(key)
    x = jax.random.normal(kx, (N,), dtype=jnp.float32)
    t_arg = jnp.zeros((), jnp.float32)     # unused `t` argument of forward

    # Parameter init mirroring __init__ (initial_decay=5, initial_wet=0.3,
    # noise_scale=1.0, blend=0.5) and the default envelope.
    params = jnp.array([5.0, 0.3, 1.0, 0.5], dtype=jnp.float32)
    t_vec = jnp.arange(L, dtype=jnp.float32) / SR
    fade_len = min(1000, L // 2)
    envelope = jnp.concatenate([
        jnp.ones((L - fade_len,), jnp.float32),
        jnp.linspace(1.0, 1e-4, fade_len, dtype=jnp.float32),
    ])
    # build_impulse draws fresh uniform(-1, 1) noise each call; fixed key here.
    noise_rand = jax.random.uniform(kn, (L,), dtype=jnp.float32,
                                    minval=-1.0, maxval=1.0)

    out = parametric_ir_reverb(x, t_arg, params, t_vec, noise_rand, envelope)
    out = jax.block_until_ready(out)

    ref = _reference_forward(x, params, t_vec, noise_rand, envelope)
    assert out.shape == (N,)
    err = float(jnp.max(jnp.abs(out - ref)))
    scale = float(jnp.max(jnp.abs(ref)))
    # The FIR deliberately runs with bf16 MXU operands (f32 accumulation):
    # worst-case error ~ sqrt(L) * 2^-8 of the convolution magnitude, i.e.
    # well under 2% of the peak, while structural errors would be O(scale).
    assert err <= 2e-2 * scale + 1e-2, (err, scale)
    print("KERNEL_OK")
</pallas_src>

<mosaic_0001>
module attributes {stable_mosaic.version = 11 : i64} {
  func.func @_impulse_kernel(%arg0: memref<4xf32, #tpu.memory_space<smem>>, %arg1: memref<1x2048xf32, #tpu.memory_space<vmem>>, %arg2: memref<1x2048xf32, #tpu.memory_space<vmem>>, %arg3: memref<1x2048xf32, #tpu.memory_space<vmem>>, %arg4: memref<1x2048xf32, #tpu.memory_space<vmem>>) attributes {dimension_semantics = [], scalar_prefetch = 0 : i64, scratch_operands = 0 : i64, tpu.core_type = #tpu.core_type<tc>} {
    %c0 = arith.constant 0 : index
    %0 = memref.load %arg0[%c0] : memref<4xf32, #tpu.memory_space<smem>>
    %c1 = arith.constant 1 : index
    %1 = memref.load %arg0[%c1] : memref<4xf32, #tpu.memory_space<smem>>
    %c2 = arith.constant 2 : index
    %2 = memref.load %arg0[%c2] : memref<4xf32, #tpu.memory_space<smem>>
    %c3 = arith.constant 3 : index
    %3 = memref.load %arg0[%c3] : memref<4xf32, #tpu.memory_space<smem>>
    %c0_0 = arith.constant 0 : index
    %c0_1 = arith.constant 0 : index
    %4 = vector.load %arg1[%c0_0, %c0_1] : memref<1x2048xf32, #tpu.memory_space<vmem>>, vector<1x2048xf32>
    %c0_2 = arith.constant 0 : index
    %c0_3 = arith.constant 0 : index
    %5 = vector.load %arg2[%c0_2, %c0_3] : memref<1x2048xf32, #tpu.memory_space<vmem>>, vector<1x2048xf32>
    %c0_4 = arith.constant 0 : index
    %c0_5 = arith.constant 0 : index
    %6 = vector.load %arg3[%c0_4, %c0_5] : memref<1x2048xf32, #tpu.memory_space<vmem>>, vector<1x2048xf32>
    %cst = arith.constant 0.000000e+00 : f32
    %7 = arith.subf %cst, %0 : f32
    %8 = vector.broadcast %7 : f32 to vector<1x1xf32>
    %cst_6 = arith.constant 0.000000e+00 : f32
    %9 = vector.broadcast %cst_6 : f32 to vector<1x1xf32>
    %10 = arith.maximumf %8, %9 : vector<1x1xf32>
    %11 = math.absf %8 : vector<1x1xf32>
    %cst_7 = arith.constant 0.000000e+00 : f32
    %12 = vector.broadcast %cst_7 : f32 to vector<1x1xf32>
    %13 = arith.subf %12, %11 : vector<1x1xf32>
    %14 = math.exp %13 : vector<1x1xf32>
    %15 = math.log1p %14 : vector<1x1xf32>
    %16 = arith.addf %10, %15 : vector<1x1xf32>
    %17 = vector.broadcast %1 : f32 to vector<1x1xf32>
    %18 = math.absf %17 : vector<1x1xf32>
    %cst_8 = arith.constant 0.000000e+00 : f32
    %19 = vector.broadcast %cst_8 : f32 to vector<1x1xf32>
    %20 = arith.subf %19, %18 : vector<1x1xf32>
    %21 = math.exp %20 : vector<1x1xf32>
    %cst_9 = arith.constant 0.000000e+00 : f32
    %22 = vector.broadcast %cst_9 : f32 to vector<1x1xf32>
    %23 = arith.cmpf oge, %17, %22 : vector<1x1xf32>
    %cst_10 = arith.constant 1.000000e+00 : f32
    %24 = vector.broadcast %cst_10 : f32 to vector<1x1xf32>
    %25 = arith.addf %24, %21 : vector<1x1xf32>
    %cst_11 = arith.constant 1.000000e+00 : f32
    %26 = vector.broadcast %cst_11 : f32 to vector<1x1xf32>
    %27 = arith.divf %26, %25 : vector<1x1xf32>
    %cst_12 = arith.constant 1.000000e+00 : f32
    %28 = vector.broadcast %cst_12 : f32 to vector<1x1xf32>
    %29 = arith.addf %28, %21 : vector<1x1xf32>
    %30 = arith.divf %21, %29 : vector<1x1xf32>
    %31 = arith.select %23, %27, %30 : vector<1x1xi1>, vector<1x1xf32>
    %cst_13 = arith.constant 0.000000e+00 : f32
    %32 = vector.broadcast %cst_13 : f32 to vector<1x1xf32>
    %33 = arith.subf %32, %16 : vector<1x1xf32>
    %34 = vector.broadcast %33 : vector<1x1xf32> to vector<1x2048xf32>
    %35 = arith.mulf %34, %4 : vector<1x2048xf32>
    %cst_14 = arith.constant 5.000000e+02 : f32
    %36 = vector.broadcast %cst_14 : f32 to vector<1x2048xf32>
    %37 = arith.mulf %35, %36 : vector<1x2048xf32>
    %38 = math.exp %37 : vector<1x2048xf32>
    %39 = vector.broadcast %2 : f32 to vector<1x2048xf32>
    %40 = arith.mulf %38, %39 : vector<1x2048xf32>
    %41 = arith.mulf %40, %5 : vector<1x2048xf32>
    %42 = vector.broadcast %2 : f32 to vector<1x2048xf32>
    %43 = arith.mulf %41, %42 : vector<1x2048xf32>
    %44 = vector.broadcast %31 : vector<1x1xf32> to vector<1x2048xf32>
    %45 = arith.mulf %43, %44 : vector<1x2048xf32>
    %46 = tpu.iota {dimensions = array<i32: 1>} : vector<1x2048xi32>
    %c0_i32 = arith.constant 0 : i32
    %47 = vector.broadcast %c0_i32 : i32 to vector<1x2048xi32>
    %48 = arith.cmpi eq, %46, %47 : vector<1x2048xi32>
    %cst_15 = arith.constant 1.000000e+00 : f32
    %49 = vector.broadcast %cst_15 : f32 to vector<1x2048xf32>
    %50 = arith.select %48, %49, %45 : vector<1x2048xi1>, vector<1x2048xf32>
    %51 = arith.mulf %50, %6 : vector<1x2048xf32>
    %52 = vector.broadcast %3 : f32 to vector<1x2048xf32>
    %53 = arith.mulf %52, %51 : vector<1x2048xf32>
    %cst_16 = arith.constant 1.000000e+00 : f32
    %54 = arith.subf %cst_16, %3 : f32
    %cst_17 = arith.constant 0.000000e+00 : f32
    %55 = vector.broadcast %54 : f32 to vector<1x2048xf32>
    %56 = vector.broadcast %cst_17 : f32 to vector<1x2048xf32>
    %57 = arith.select %48, %55, %56 : vector<1x2048xi1>, vector<1x2048xf32>
    %58 = arith.addf %53, %57 : vector<1x2048xf32>
    %c0_18 = arith.constant 0 : index
    %c0_19 = arith.constant 0 : index
    %59 = vector.load %arg4[%c0_18, %c0_19] : memref<1x2048xf32, #tpu.memory_space<vmem>>, vector<1x2048xf32>
    tpu.vector_store %arg4[%c0_18, %c0_19], %58 {strides = array<i32>} : memref<1x2048xf32, #tpu.memory_space<vmem>>, vector<1x2048xf32>,
    return
  }
}

</mosaic_0001>

<llo_original>
// kernel: tpu_custom_call.1
$region0: #{tpu_custom_call.1}
  #allocation0 [shape = 'u32[]', space=smem, size = 0x4, offset = 0x4, fixed_abs, tag = 'smem constant byte address 0x4 - core index']
  #allocation1 [shape = 'u32[144,128]{1,0:T(1,128)}', space=vmem, size = 0x12000, scoped, tag = 'internal scratch']
  %s0 = inlined_call_operand.hbm [shape: f32[4], index: 0, kind: input, shape index: {}]
  %s1 = inlined_call_operand.hbm [shape: f32[1,2048], index: 1, kind: input, shape index: {}]
  %s2 = inlined_call_operand.hbm [shape: f32[1,2048], index: 2, kind: input, shape index: {}]
  %s3 = inlined_call_operand.hbm [shape: f32[1,2048], index: 3, kind: input, shape index: {}]
  %s4 = inlined_call_operand.hbm [shape: f32[1,2048], index: 4, kind: output, shape index: {}]
  %s5 = sld [smem:[#allocation0]]
  $region42: #{tpu_custom_call.1} parent=0
    _
  %s7 = ssub.s32 1, %s5
  %s8 = scalar_select 0, %s7, %s5
  $region1: #{tpu_custom_call.1} parent=0
    #allocation2 [shape = 'u8[512]{0}', space=smem, size = 0x200, scoped, tag = 'input window, operand 0, single buffered']
    #allocation3 [shape = 's32[1]{0}', space=sflag, size = 0x4, scoped, tag = 'scoped memory for tpu_custom_call.1']
    #allocation4 [shape = 's32[1]{0}', space=sflag, size = 0x4, scoped, tag = 'scoped memory for tpu_custom_call.1']
    #allocation5 [shape = 's32[1]{0}', space=sflag, size = 0x4, scoped, tag = 'scoped memory for tpu_custom_call.1']
    #allocation6 [shape = 'u8[8192]{0}', space=vmem, size = 0x2000, scoped, tag = 'input window, operand 1, single buffered']
    #allocation7 [shape = 'u8[8192]{0}', space=vmem, size = 0x2000, scoped, tag = 'input window, operand 2, single buffered']
    #allocation8 [shape = 's32[1]{0}', space=sflag, size = 0x4, scoped, tag = 'scoped memory for tpu_custom_call.1']
    #allocation9 [shape = 'u8[8192]{0}', space=vmem, size = 0x2000, scoped, tag = 'input window, operand 3, single buffered']
    #allocation10 [shape = 'u8[8192]{0}', space=vmem, size = 0x2000, scoped, tag = 'output window, operand 0, single buffered']
    %9 = vsyncpa [#allocation5], 0
    %10 = vsyncpa [#allocation3], 0
    %11 = vsyncpa [#allocation8], 0
    %12 = vsyncpa [#allocation4], 0
    // Predicated region
    $region2: #{tpu_custom_call.1} parent=1 // pred_check
      _
    $region3: #{tpu_custom_call.1} parent=1 // pred_check_branch
      %14 = sbr.rel (0) target = $region5
    $region4: #{tpu_custom_call.1} parent=1 // pred_region
      %s16 = ssub.s32 16, 16
      %17 = vsyncadd [#allocation5], %s16
      %20 = dma.hbm_to_smem %s0, 16, [#allocation2], [#allocation5]
    $region5: #{tpu_custom_call.1} parent=1 // pred_fallthru
      _
    // Predicated region
    $region6: #{tpu_custom_call.1} parent=1 // pred_check
      _
    $region7: #{tpu_custom_call.1} parent=1 // pred_check_branch
      %22 = sbr.rel (0) target = $region9
    $region8: #{tpu_custom_call.1} parent=1 // pred_region
      %s24 = ssub.s32 256, 256
      %25 = vsyncadd [#allocation3], %s24
      %s27 = sshll.u32 [#allocation6], 4
      %s28 = int_to_ptr.vmem [resolvable:$true] %s27
      %30 = dma.hbm_to_vmem [thread:$0]  %s1, 256, %s28, [#allocation3]
    $region9: #{tpu_custom_call.1} parent=1 // pred_fallthru
      _
    // Predicated region
    $region10: #{tpu_custom_call.1} parent=1 // pred_check
      _
    $region11: #{tpu_custom_call.1} parent=1 // pred_check_branch
      %32 = sbr.rel (0) target = $region13
    $region12: #{tpu_custom_call.1} parent=1 // pred_region
      %s34 = ssub.s32 256, 256
      %35 = vsyncadd [#allocation8], %s34
      %s37 = sshll.u32 [#allocation7], 4
      %s38 = int_to_ptr.vmem [resolvable:$true] %s37
      %40 = dma.hbm_to_vmem [thread:$0]  %s2, 256, %s38, [#allocation8]
    $region13: #{tpu_custom_call.1} parent=1 // pred_fallthru
      _
    // Predicated region
    $region14: #{tpu_custom_call.1} parent=1 // pred_check
      _
    $region15: #{tpu_custom_call.1} parent=1 // pred_check_branch
      %42 = sbr.rel (0) target = $region17
    $region16: #{tpu_custom_call.1} parent=1 // pred_region
      %s44 = ssub.s32 256, 256
      %45 = vsyncadd [#allocation8], %s44
      %s47 = sshll.u32 [#allocation9], 4
      %s48 = int_to_ptr.vmem [resolvable:$true] %s47
      %50 = dma.hbm_to_vmem [thread:$0]  %s3, 256, %s48, [#allocation8]
    $region17: #{tpu_custom_call.1} parent=1 // pred_fallthru
      _
    // Predicated region
    $region18: #{tpu_custom_call.1} parent=1 // pred_check
      _
    $region19: #{tpu_custom_call.1} parent=1 // pred_check_branch
      %52 = sbr.rel (0) target = $region21
    $region20: #{tpu_custom_call.1} parent=1 // pred_region
      %53 = dma.done [#allocation5], 16
    $region21: #{tpu_custom_call.1} parent=1 // pred_fallthru
      _
    // Predicated region
    $region22: #{tpu_custom_call.1} parent=1 // pred_check
      _
    $region23: #{tpu_custom_call.1} parent=1 // pred_check_branch
      %55 = sbr.rel (0) target = $region25
    $region24: #{tpu_custom_call.1} parent=1 // pred_region
      %56 = dma.done [#allocation3], 256
    $region25: #{tpu_custom_call.1} parent=1 // pred_fallthru
      _
    // Predicated region
    $region26: #{tpu_custom_call.1} parent=1 // pred_check
      _
    $region27: #{tpu_custom_call.1} parent=1 // pred_check_branch
      %58 = sbr.rel (0) target = $region29
    $region28: #{tpu_custom_call.1} parent=1 // pred_region
      %59 = dma.done [#allocation8], 256
    $region29: #{tpu_custom_call.1} parent=1 // pred_fallthru
      _
    // Predicated region
    $region30: #{tpu_custom_call.1} parent=1 // pred_check
      _
    $region31: #{tpu_custom_call.1} parent=1 // pred_check_branch
      %61 = sbr.rel (0) target = $region33
    $region32: #{tpu_custom_call.1} parent=1 // pred_region
      %62 = dma.done [#allocation8], 256
    $region33: #{tpu_custom_call.1} parent=1 // pred_fallthru
      _
    %63 = sfence
    %s64 = sld [smem:[#allocation2]]
    %s65 = sld [smem:[#allocation2 + $0x1]]
    %s66 = sld [smem:[#allocation2 + $0x2]]
    %s67 = sld [smem:[#allocation2 + $0x3]]
    %v68 = vld [vmem:[#allocation6] sm:$0xff]
    %v69 = vld [vmem:[#allocation6 + $0x8] sm:$0xff]
    %v70 = vld [vmem:[#allocation7] sm:$0xff]
    %v71 = vld [vmem:[#allocation7 + $0x8] sm:$0xff]
    %v72 = vld [vmem:[#allocation9] sm:$0xff]
    %v73 = vld [vmem:[#allocation9 + $0x8] sm:$0xff]
    %s74 = ssub.f32 0.0, %s64
    %v75 = vstv %s74
    %v76 = vmax.f32 %v75, 0.0
    %v77 = vand.u32 2147483647, %v75
    %v78 = vsub.f32 0.0, %v77
    %v79 = vmul.f32 %v78, 1.442695
    %v80 = vpow.pop %v79
    %v81 = vadd.f32 %v80, 1.0
    %v82 = vlog2.pop %v81
    %v83 = vmul.f32 %v82, 0.6931472
    %v84 = vmul.f32 -0.5, %v80
    %v85 = vadd.f32 %v84, 1.0
    %v86 = vmul.f32 %v85, %v80
    %v87 = vand.u32 2147483647, %v80
    %vm88 = vcmp.lt.f32.partialorder %v87, 0.0004427343
    %v89 = vsel %vm88, %v86, %v83
    %v90 = vadd.f32 %v76, %v89
    %v91 = vstv %s65
    %v92 = vand.u32 2147483647, %v91
    %v93 = vsub.f32 0.0, %v92
    %v94 = vmul.f32 %v93, 1.442695
    %v95 = vpow.pop %v94
    %vm96 = vcmp.ge.f32.partialorder %v91, 0.0
    %v97 = vadd.f32 %v95, 1.0
    %v98 = vrcp.pop %v97
    %v99 = vmul.f32 1.0, %v98
    %v100 = vmul.f32 %v95, %v98
    %v101 = vsel %vm96, %v99, %v100
    %v102 = vsub.f32 0.0, %v90
    %v103 = vmul.f32 %v102, %v68
    %v104 = vmul.f32 %v102, %v69
    %v105 = vmul.f32 %v103, 500.0
    %v106 = vmul.f32 %v104, 500.0
    %v107 = vmul.f32 %v105, 1.442695
    %v108 = vpow.pop %v107
    %v109 = vmul.f32 %v106, 1.442695
    %v110 = vpow.pop %v109
    %v111 = vstv %s66
    %v112 = vmul.f32 %v108, %v111
    %v113 = vmul.f32 %v110, %v111
    %v114 = vmul.f32 %v112, %v70
    %v115 = vmul.f32 %v113, %v71
    %v116 = vmul.f32 %v114, %v111
    %v117 = vmul.f32 %v115, %v111
    %v118 = vmul.f32 %v116, %v101
    %v119 = vmul.f32 %v117, %v101
    %v120 = vlaneseq
    %v121 = vand.u32 %v120, 127
    %v122 = vadd.s32 %v121, 128
    %v123 = vadd.s32 %v121, 256
    %v124 = vadd.s32 %v121, 384
    %v125 = vadd.s32 %v121, 512
    %v126 = vadd.s32 %v121, 640
    %v127 = vadd.s32 %v121, 768
    %v128 = vadd.s32 %v121, 896
    %v129 = vadd.s32 %v121, 1024
    %v130 = vadd.s32 %v121, 1152
    %v131 = vadd.s32 %v121, 1280
    %v132 = vadd.s32 %v121, 1408
    %v133 = vadd.s32 %v121, 1536
    %v134 = vadd.s32 %v121, 1664
    %v135 = vadd.s32 %v121, 1792
    %v136 = vadd.s32 %v121, 1920
    %vm137 = vcmp.eq.s32.totalorder %v121, 0
    %vm138 = vcmp.eq.s32.totalorder %v122, 0
    %vm139 = vcmp.eq.s32.totalorder %v123, 0
    %vm140 = vcmp.eq.s32.totalorder %v124, 0
    %vm141 = vcmp.eq.s32.totalorder %v125, 0
    %vm142 = vcmp.eq.s32.totalorder %v126, 0
    %vm143 = vcmp.eq.s32.totalorder %v127, 0
    %vm144 = vcmp.eq.s32.totalorder %v128, 0
    %vm145 = vcmp.eq.s32.totalorder %v129, 0
    %vm146 = vcmp.eq.s32.totalorder %v130, 0
    %vm147 = vcmp.eq.s32.totalorder %v131, 0
    %vm148 = vcmp.eq.s32.totalorder %v132, 0
    %vm149 = vcmp.eq.s32.totalorder %v133, 0
    %vm150 = vcmp.eq.s32.totalorder %v134, 0
    %vm151 = vcmp.eq.s32.totalorder %v135, 0
    %vm152 = vcmp.eq.s32.totalorder %v136, 0
    %v155 = vlaneseq
    %v156 = vshrl.u32 %v155, 7
    %v157 = vsub.s32 0, %v156
    %v158 = vrot.slane %v118, %v157
    %v159 = vlaneseq
    %v160 = vshrl.u32 %v159, 7
    %v161 = vsub.s32 1, %v160
    %v162 = vrot.slane %v118, %v161
    %v163 = vlaneseq
    %v164 = vshrl.u32 %v163, 7
    %v165 = vsub.s32 2, %v164
    %v166 = vrot.slane %v118, %v165
    %v167 = vlaneseq
    %v168 = vshrl.u32 %v167, 7
    %v169 = vsub.s32 3, %v168
    %v170 = vrot.slane %v118, %v169
    %v171 = vlaneseq
    %v172 = vshrl.u32 %v171, 7
    %v173 = vsub.s32 4, %v172
    %v174 = vrot.slane %v118, %v173
    %v175 = vlaneseq
    %v176 = vshrl.u32 %v175, 7
    %v177 = vsub.s32 5, %v176
    %v178 = vrot.slane %v118, %v177
    %v179 = vlaneseq
    %v180 = vshrl.u32 %v179, 7
    %v181 = vsub.s32 6, %v180
    %v182 = vrot.slane %v118, %v181
    %v183 = vlaneseq
    %v184 = vshrl.u32 %v183, 7
    %v185 = vsub.s32 7, %v184
    %v186 = vrot.slane %v118, %v185
    %v187 = vlaneseq
    %v188 = vshrl.u32 %v187, 7
    %v189 = vsub.s32 0, %v188
    %v190 = vrot.slane %v119, %v189
    %v191 = vlaneseq
    %v192 = vshrl.u32 %v191, 7
    %v193 = vsub.s32 1, %v192
    %v194 = vrot.slane %v119, %v193
    %v195 = vlaneseq
    %v196 = vshrl.u32 %v195, 7
    %v197 = vsub.s32 2, %v196
    %v198 = vrot.slane %v119, %v197
    %v199 = vlaneseq
    %v200 = vshrl.u32 %v199, 7
    %v201 = vsub.s32 3, %v200
    %v202 = vrot.slane %v119, %v201
    %v203 = vlaneseq
    %v204 = vshrl.u32 %v203, 7
    %v205 = vsub.s32 4, %v204
    %v206 = vrot.slane %v119, %v205
    %v207 = vlaneseq
    %v208 = vshrl.u32 %v207, 7
    %v209 = vsub.s32 5, %v208
    %v210 = vrot.slane %v119, %v209
    %v211 = vlaneseq
    %v212 = vshrl.u32 %v211, 7
    %v213 = vsub.s32 6, %v212
    %v214 = vrot.slane %v119, %v213
    %v215 = vlaneseq
    %v216 = vshrl.u32 %v215, 7
    %v217 = vsub.s32 7, %v216
    %v218 = vrot.slane %v119, %v217
    %v235 = vsel %vm137, 1.0, %v158
    %v236 = vsel %vm138, 1.0, %v162
    %v237 = vsel %vm139, 1.0, %v166
    %v238 = vsel %vm140, 1.0, %v170
    %v239 = vsel %vm141, 1.0, %v174
    %v240 = vsel %vm142, 1.0, %v178
    %v241 = vsel %vm143, 1.0, %v182
    %v242 = vsel %vm144, 1.0, %v186
    %v243 = vsel %vm145, 1.0, %v190
    %v244 = vsel %vm146, 1.0, %v194
    %v245 = vsel %vm147, 1.0, %v198
    %v246 = vsel %vm148, 1.0, %v202
    %v247 = vsel %vm149, 1.0, %v206
    %v248 = vsel %vm150, 1.0, %v210
    %v249 = vsel %vm151, 1.0, %v214
    %v250 = vsel %vm152, 1.0, %v218
    %v253 = vlaneseq
    %v254 = vshrl.u32 %v253, 7
    %v255 = vsub.s32 0, %v254
    %v256 = vrot.slane %v72, %v255
    %v257 = vlaneseq
    %v258 = vshrl.u32 %v257, 7
    %v259 = vsub.s32 1, %v258
    %v260 = vrot.slane %v72, %v259
    %v261 = vlaneseq
    %v262 = vshrl.u32 %v261, 7
    %v263 = vsub.s32 2, %v262
    %v264 = vrot.slane %v72, %v263
    %v265 = vlaneseq
    %v266 = vshrl.u32 %v265, 7
    %v267 = vsub.s32 3, %v266
    %v268 = vrot.slane %v72, %v267
    %v269 = vlaneseq
    %v270 = vshrl.u32 %v269, 7
    %v271 = vsub.s32 4, %v270
    %v272 = vrot.slane %v72, %v271
    %v273 = vlaneseq
    %v274 = vshrl.u32 %v273, 7
    %v275 = vsub.s32 5, %v274
    %v276 = vrot.slane %v72, %v275
    %v277 = vlaneseq
    %v278 = vshrl.u32 %v277, 7
    %v279 = vsub.s32 6, %v278
    %v280 = vrot.slane %v72, %v279
    %v281 = vlaneseq
    %v282 = vshrl.u32 %v281, 7
    %v283 = vsub.s32 7, %v282
    %v284 = vrot.slane %v72, %v283
    %v285 = vlaneseq
    %v286 = vshrl.u32 %v285, 7
    %v287 = vsub.s32 0, %v286
    %v288 = vrot.slane %v73, %v287
    %v289 = vlaneseq
    %v290 = vshrl.u32 %v289, 7
    %v291 = vsub.s32 1, %v290
    %v292 = vrot.slane %v73, %v291
    %v293 = vlaneseq
    %v294 = vshrl.u32 %v293, 7
    %v295 = vsub.s32 2, %v294
    %v296 = vrot.slane %v73, %v295
    %v297 = vlaneseq
    %v298 = vshrl.u32 %v297, 7
    %v299 = vsub.s32 3, %v298
    %v300 = vrot.slane %v73, %v299
    %v301 = vlaneseq
    %v302 = vshrl.u32 %v301, 7
    %v303 = vsub.s32 4, %v302
    %v304 = vrot.slane %v73, %v303
    %v305 = vlaneseq
    %v306 = vshrl.u32 %v305, 7
    %v307 = vsub.s32 5, %v306
    %v308 = vrot.slane %v73, %v307
    %v309 = vlaneseq
    %v310 = vshrl.u32 %v309, 7
    %v311 = vsub.s32 6, %v310
    %v312 = vrot.slane %v73, %v311
    %v313 = vlaneseq
    %v314 = vshrl.u32 %v313, 7
    %v315 = vsub.s32 7, %v314
    %v316 = vrot.slane %v73, %v315
    %v333 = vmul.f32 %v235, %v256
    %v334 = vmul.f32 %v236, %v260
    %v335 = vmul.f32 %v237, %v264
    %v336 = vmul.f32 %v238, %v268
    %v337 = vmul.f32 %v239, %v272
    %v338 = vmul.f32 %v240, %v276
    %v339 = vmul.f32 %v241, %v280
    %v340 = vmul.f32 %v242, %v284
    %v341 = vmul.f32 %v243, %v288
    %v342 = vmul.f32 %v244, %v292
    %v343 = vmul.f32 %v245, %v296
    %v344 = vmul.f32 %v246, %v300
    %v345 = vmul.f32 %v247, %v304
    %v346 = vmul.f32 %v248, %v308
    %v347 = vmul.f32 %v249, %v312
    %v348 = vmul.f32 %v250, %v316
    %v349 = vstv %s67
    %v350 = vmul.f32 %v349, %v333
    %v351 = vmul.f32 %v349, %v334
    %v352 = vmul.f32 %v349, %v335
    %v353 = vmul.f32 %v349, %v336
    %v354 = vmul.f32 %v349, %v337
    %v355 = vmul.f32 %v349, %v338
    %v356 = vmul.f32 %v349, %v339
    %v357 = vmul.f32 %v349, %v340
    %v358 = vmul.f32 %v349, %v341
    %v359 = vmul.f32 %v349, %v342
    %v360 = vmul.f32 %v349, %v343
    %v361 = vmul.f32 %v349, %v344
    %v362 = vmul.f32 %v349, %v345
    %v363 = vmul.f32 %v349, %v346
    %v364 = vmul.f32 %v349, %v347
    %v365 = vmul.f32 %v349, %v348
    %s366 = ssub.f32 1.0, %s67
    %v367 = vstv %s366
    %v368 = vsel %vm137, %v367, 0.0
    %v369 = vsel %vm138, %v367, 0.0
    %v370 = vsel %vm139, %v367, 0.0
    %v371 = vsel %vm140, %v367, 0.0
    %v372 = vsel %vm141, %v367, 0.0
    %v373 = vsel %vm142, %v367, 0.0
    %v374 = vsel %vm143, %v367, 0.0
    %v375 = vsel %vm144, %v367, 0.0
    %v376 = vsel %vm145, %v367, 0.0
    %v377 = vsel %vm146, %v367, 0.0
    %v378 = vsel %vm147, %v367, 0.0
    %v379 = vsel %vm148, %v367, 0.0
    %v380 = vsel %vm149, %v367, 0.0
    %v381 = vsel %vm150, %v367, 0.0
    %v382 = vsel %vm151, %v367, 0.0
    %v383 = vsel %vm152, %v367, 0.0
    %v384 = vadd.f32 %v350, %v368
    %v385 = vadd.f32 %v351, %v369
    %v386 = vadd.f32 %v352, %v370
    %v387 = vadd.f32 %v353, %v371
    %v388 = vadd.f32 %v354, %v372
    %v389 = vadd.f32 %v355, %v373
    %v390 = vadd.f32 %v356, %v374
    %v391 = vadd.f32 %v357, %v375
    %v392 = vadd.f32 %v358, %v376
    %v393 = vadd.f32 %v359, %v377
    %v394 = vadd.f32 %v360, %v378
    %v395 = vadd.f32 %v361, %v379
    %v396 = vadd.f32 %v362, %v380
    %v397 = vadd.f32 %v363, %v381
    %v398 = vadd.f32 %v364, %v382
    %v399 = vadd.f32 %v365, %v383
    %v416 = vcombine.low %v384, %v385
    %v417 = vcombine.low %v386, %v387
    %v418 = vcombine.low %v388, %v389
    %v419 = vcombine.low %v390, %v391
    %v421 = vunpack.c.l.s4 1966171168
    %v422 = vunpack.c.0.s8 %v421
    %v423 = vlaneseq
    %v424 = vshrl.u32 %v423, 7
    %v425 = vsub.s32 %v422, %v424
    %v426 = vrot.slane %v416, %v425
    %v428 = vunpack.c.l.s4 1966171168
    %v429 = vunpack.c.0.s8 %v428
    %v430 = vlaneseq
    %v431 = vshrl.u32 %v430, 7
    %v432 = vsub.s32 %v429, %v431
    %v433 = vrot.slane %v417, %v432
    %v435 = vunpack.c.l.s4 1966171168
    %v436 = vunpack.c.0.s8 %v435
    %v437 = vlaneseq
    %v438 = vshrl.u32 %v437, 7
    %v439 = vsub.s32 %v436, %v438
    %v440 = vrot.slane %v418, %v439
    %v442 = vunpack.c.l.s4 1966171168
    %v443 = vunpack.c.0.s8 %v442
    %v444 = vlaneseq
    %v445 = vshrl.u32 %v444, 7
    %v446 = vsub.s32 %v443, %v445
    %v447 = vrot.slane %v419, %v446
    %v448 = vcombine.low %v426, %v433
    %v449 = vcombine.low %v440, %v447
    %v451 = vunpack.c.l.s4 1966171168
    %v452 = vunpack.c.0.s8 %v451
    %v453 = vlaneseq
    %v454 = vshrl.u32 %v453, 7
    %v455 = vsub.s32 %v452, %v454
    %v456 = vrot.slane %v448, %v455
    %v458 = vunpack.c.l.s4 1966171168
    %v459 = vunpack.c.0.s8 %v458
    %v460 = vlaneseq
    %v461 = vshrl.u32 %v460, 7
    %v462 = vsub.s32 %v459, %v461
    %v463 = vrot.slane %v449, %v462
    %v464 = vcombine.low %v456, %v463
    %v465 = vcombine.low %v392, %v393
    %v466 = vcombine.low %v394, %v395
    %v467 = vcombine.low %v396, %v397
    %v468 = vcombine.low %v398, %v399
    %v470 = vunpack.c.l.s4 1966171168
    %v471 = vunpack.c.0.s8 %v470
    %v472 = vlaneseq
    %v473 = vshrl.u32 %v472, 7
    %v474 = vsub.s32 %v471, %v473
    %v475 = vrot.slane %v465, %v474
    %v477 = vunpack.c.l.s4 1966171168
    %v478 = vunpack.c.0.s8 %v477
    %v479 = vlaneseq
    %v480 = vshrl.u32 %v479, 7
    %v481 = vsub.s32 %v478, %v480
    %v482 = vrot.slane %v466, %v481
    %v484 = vunpack.c.l.s4 1966171168
    %v485 = vunpack.c.0.s8 %v484
    %v486 = vlaneseq
    %v487 = vshrl.u32 %v486, 7
    %v488 = vsub.s32 %v485, %v487
    %v489 = vrot.slane %v467, %v488
    %v491 = vunpack.c.l.s4 1966171168
    %v492 = vunpack.c.0.s8 %v491
    %v493 = vlaneseq
    %v494 = vshrl.u32 %v493, 7
    %v495 = vsub.s32 %v492, %v494
    %v496 = vrot.slane %v468, %v495
    %v497 = vcombine.low %v475, %v482
    %v498 = vcombine.low %v489, %v496
    %v500 = vunpack.c.l.s4 1966171168
    %v501 = vunpack.c.0.s8 %v500
    %v502 = vlaneseq
    %v503 = vshrl.u32 %v502, 7
    %v504 = vsub.s32 %v501, %v503
    %v505 = vrot.slane %v497, %v504
    %v507 = vunpack.c.l.s4 1966171168
    %v508 = vunpack.c.0.s8 %v507
    %v509 = vlaneseq
    %v510 = vshrl.u32 %v509, 7
    %v511 = vsub.s32 %v508, %v510
    %v512 = vrot.slane %v498, %v511
    %v513 = vcombine.low %v505, %v512
    %516 = vst [vmem:[#allocation10] sm:$0xff] %v464
    %517 = vst [vmem:[#allocation10 + $0x8] sm:$0xff] %v513
    // Predicated region
    $region34: #{tpu_custom_call.1} parent=1 // pred_check
      _
    $region35: #{tpu_custom_call.1} parent=1 // pred_check_branch
      %519 = sbr.rel (0) target = $region37
    $region36: #{tpu_custom_call.1} parent=1 // pred_region
      %s521 = ssub.s32 256, 256
      %522 = vsyncadd [#allocation4], %s521
      %s524 = sshll.u32 [#allocation10], 4
      %s525 = int_to_ptr.vmem [resolvable:$true] %s524
      %527 = dma.vmem_to_hbm [thread:$0]  %s525, 256, %s4, [#allocation4]
    $region37: #{tpu_custom_call.1} parent=1 // pred_fallthru
      _
    // Predicated region
    $region38: #{tpu_custom_call.1} parent=1 // pred_check
      _
    $region39: #{tpu_custom_call.1} parent=1 // pred_check_branch
      %529 = sbr.rel (0) target = $region41
    $region40: #{tpu_custom_call.1} parent=1 // pred_region
      %530 = dma.done [#allocation4], 256
    $region41: #{tpu_custom_call.1} parent=1 // pred_fallthru
      _
    %531 = vsyncpa [#allocation3], 1
    %532 = vsyncpa [#allocation8], 1
    %533 = vsyncpa [#allocation4], 1
    %534 = vsyncpa [#allocation5], 1

</llo_original>
